<compile_context>
chip_gen: v6e
topology: v6e:2x2x1
jax: 0.10.0
libtpu: 0.0.40
codegen_flags: <defaults>
</compile_context>

<pallas_src>
import jax
import jax.numpy as jnp
from jax.experimental import pallas as pl
from jax.experimental.pallas import tpu as pltpu


_VMEM_LIMIT = 32 * 1024 * 1024   # >= default scoped limits everywhere; re-budget vs
                                 # 64 MiB (v7x) / 128 MiB (v5e/v6e) for bigger tiles.


# ----------------------------- Pallas kernels ------------------------------ #

def input_proj_kernel(x_ref, w_ref, b_ref, o_ref):
    """One (direction, row-tile) block of gx = x @ W_ih + (b_ih + b_hh)."""
    o_ref[0] = (jnp.dot(x_ref[...], w_ref[0],
                        preferred_element_type=jnp.float32)
                + b_ref[0]).astype(o_ref.dtype)


def bilstm_kernel(gxf_ref, gxb_ref, whh_ref, outf_ref, outb_ref,
                  hf_s, cf_s, hb_s, cb_s):
    """One (batch-block, time-chunk) step of the fused forward+backward recurrence.

    gxf_ref : (1, Tc, Bb, 4H) forward input gates for time chunk i (bias included)
    gxb_ref : (1, Tc, Bb, 4H) backward input gates for time chunk Tn-1-i
    whh_ref : (2, H, 4H)      recurrent weights [W_hh_f, W_hh_b] (no zero padding)
    outf_ref: (Tc, Bb, H)     forward hidden states for chunk i
    outb_ref: (Tc, Bb, H)     backward hidden states for chunk Tn-1-i
    hf_s/cf_s/hb_s/cb_s : (Bb, H) persistent per-direction carries
    """
    Tc = outf_ref.shape[0]
    H = whh_ref.shape[1]

    # Reset carries only at the start of each batch-block's time sweep; scratch
    # persists across grid steps so the carry flows between time chunks.
    @pl.when(pl.program_id(1) == 0)
    def _():
        hf_s[...] = jnp.zeros_like(hf_s)
        cf_s[...] = jnp.zeros_like(cf_s)
        hb_s[...] = jnp.zeros_like(hb_s)
        cb_s[...] = jnp.zeros_like(cb_s)

    gxf = gxf_ref.at[0]          # (Tc, Bb, 4H), consumed time-ascending
    gxb = gxb_ref.at[0]          # (Tc, Bb, 4H), consumed time-descending
    w_f = whh_ref[0]             # (H, 4H)
    w_b = whh_ref[1]             # (H, 4H)

    def gates(g, c_prev):        # PyTorch gate order: i, f, g, o
        i_g = jax.nn.sigmoid(g[:, 0 * H:1 * H])
        f_g = jax.nn.sigmoid(g[:, 1 * H:2 * H])
        g_g = jnp.tanh(g[:, 2 * H:3 * H])
        o_g = jax.nn.sigmoid(g[:, 3 * H:4 * H])
        c_n = f_g * c_prev + i_g * g_g
        h_n = o_g * jnp.tanh(c_n)
        return h_n, c_n

    def step(t, carry):
        h_f, c_f, h_b, c_b = carry
        rt = Tc - 1 - t
        g_f = gxf[t] + jnp.dot(h_f, w_f, preferred_element_type=jnp.float32)
        g_b = gxb[rt] + jnp.dot(h_b, w_b, preferred_element_type=jnp.float32)
        h_f, c_f = gates(g_f, c_f)
        h_b, c_b = gates(g_b, c_b)
        outf_ref[t] = h_f.astype(outf_ref.dtype)       # time (chunk i)*Tc + t
        outb_ref[rt] = h_b.astype(outb_ref.dtype)      # time (chunk Tn-1-i)*Tc + rt
        return h_f, c_f, h_b, c_b

    carry = (hf_s[...], cf_s[...], hb_s[...], cb_s[...])
    h_f, c_f, h_b, c_b = jax.lax.fori_loop(0, Tc, step, carry, unroll=2)

    hf_s[...] = h_f
    cf_s[...] = c_f
    hb_s[...] = h_b
    cb_s[...] = c_b


# ----------------------------- wrappers ------------------------------------ #

def _pick_chunk(n, target):
    """Largest divisor of n that is <= target (and >= 1)."""
    c = max(1, min(n, target))
    while n % c:
        c -= 1
    return c


def input_projection(x_flat, w_ih, b_ih, *, tm):
    """gx[d] = x_flat @ w_ih[d] + b_ih[d], row-tiled, both grid axes parallel."""
    M, E = x_flat.shape
    G = w_ih.shape[-1]                       # 4H
    n_rows = M // tm
    return pl.pallas_call(
        input_proj_kernel,
        out_shape=jax.ShapeDtypeStruct((2, M, G), jnp.float32),
        grid=(2, n_rows),
        in_specs=[pl.BlockSpec((tm, E), lambda d, i: (i, 0)),
                  pl.BlockSpec((1, E, G), lambda d, i: (d, 0, 0)),
                  pl.BlockSpec((1, 1, G), lambda d, i: (d, 0, 0))],
        out_specs=pl.BlockSpec((1, tm, G), lambda d, i: (d, i, 0)),
        compiler_params=pltpu.CompilerParams(
            dimension_semantics=("parallel", "parallel"),
            vmem_limit_bytes=_VMEM_LIMIT),
    )(x_flat, w_ih, b_ih)


def bidirectional_lstm(gx, w_hh, *, tc, bb):
    """Time-chunked fused bidirectional recurrence.

    gx   : (2, T, Bp, 4H) precomputed input gates per direction (bias folded in)
    w_hh : (2, H, 4H)
    returns (out_f, out_b), each (T, Bp, H)
    """
    _, T, Bp, G4 = gx.shape
    H = w_hh.shape[1]
    Tn = T // tc
    Nb = Bp // bb

    return pl.pallas_call(
        bilstm_kernel,
        out_shape=(jax.ShapeDtypeStruct((T, Bp, H), jnp.float32),
                   jax.ShapeDtypeStruct((T, Bp, H), jnp.float32)),
        grid=(Nb, Tn),
        in_specs=[
            # forward end of the sequence, chunk i
            pl.BlockSpec((1, tc, bb, G4), lambda b, i: (0, i, b, 0)),
            # backward end of the sequence, chunk Tn-1-i
            pl.BlockSpec((1, tc, bb, G4), lambda b, i: (1, Tn - 1 - i, b, 0)),
            pl.BlockSpec((2, H, G4), lambda b, i: (0, 0, 0)),
        ],
        out_specs=[
            pl.BlockSpec((tc, bb, H), lambda b, i: (i, b, 0)),
            pl.BlockSpec((tc, bb, H), lambda b, i: (Tn - 1 - i, b, 0)),
        ],
        scratch_shapes=[pltpu.VMEM((bb, H), jnp.float32),   # h_f
                        pltpu.VMEM((bb, H), jnp.float32),   # c_f
                        pltpu.VMEM((bb, H), jnp.float32),   # h_b
                        pltpu.VMEM((bb, H), jnp.float32)],  # c_b
        compiler_params=pltpu.CompilerParams(
            dimension_semantics=("parallel", "arbitrary"),
            vmem_limit_bytes=_VMEM_LIMIT),
    )(gx, gx, w_hh)


def prepare_encoder_params(params):
    """One-time weight prep (hoisted out of the forward pass)."""
    return dict(
        embed=params["embed"],
        w_ih=jnp.stack([params["w_ih_f"], params["w_ih_b"]], axis=0),   # (2, E, 4H)
        b_ih=jnp.stack([params["b_f"], params["b_b"]], axis=0),         # (2, 1, 4H)
        w_hh=jnp.stack([params["w_hh_f"], params["w_hh_b"]], axis=0),   # (2, H, 4H)
    )


def encoder_rnn_forward(tokens, prep):
    """EncoderRNN.forward(sentence, lengths=None): (B, T) int32 -> (B, T, H) f32."""
    B, T = tokens.shape
    E = prep["embed"].shape[1]
    H = prep["w_hh"].shape[1]

    # time-major embedding gather (B, T) -> (T, B, E); no activation transpose
    x_tbe = jnp.take(prep["embed"], tokens.T, axis=0)

    # pad batch up to the f32 sublane quantum (8)
    Bp = max(8, ((B + 7) // 8) * 8)
    if Bp != B:
        x_tbe = jnp.pad(x_tbe, ((0, 0), (0, Bp - B), (0, 0)))

    # tile sizes: projection row-tile (~512 rows), recurrence time chunk,
    # batch split for v7x's two TensorCores (only when the padded batch allows it)
    tt = _pick_chunk(T, max(1, 512 // Bp))
    tc = _pick_chunk(T, min(32, max(1, T // 2)))
    bb = Bp // 2 if Bp % 16 == 0 else Bp

    # input projection for both directions as one tiled GEMM, bias folded in once
    gx = input_projection(x_tbe.reshape(T * Bp, E), prep["w_ih"], prep["b_ih"],
                          tm=tt * Bp)
    gx = gx.reshape(2, T, Bp, 4 * H)

    out_f, out_b = bidirectional_lstm(gx, prep["w_hh"], tc=tc, bb=bb)

    # sum of directions (out[:, :, :H] + out[:, :, H:] in the PyTorch module);
    # a single fused XLA add over the H-wide outputs.
    out = out_f + out_b                                                  # (T, Bp, H)
    return jnp.transpose(out[:, :B, :], (1, 0, 2))                       # (B, T, H)


# ----------------------------- parameter init ------------------------------ #

def init_params(key, v_size, emb_dim, h_dim, pad_idx):
    ks = jax.random.split(key, 9)
    k_bound = 1.0 / jnp.sqrt(jnp.float32(h_dim))

    embed = jax.random.normal(ks[0], (v_size, emb_dim), jnp.float32)
    if pad_idx is not None:
        embed = embed.at[pad_idx].set(0.0)         # padding_idx row is zero

    def u(k, shape):
        return jax.random.uniform(k, shape, jnp.float32, -k_bound, k_bound)

    # PyTorch stores (4H, E)/(4H, H); keep transposed (E, 4H)/(H, 4H) for the kernels.
    w_ih_f = u(ks[1], (emb_dim, 4 * h_dim))
    w_hh_f = u(ks[2], (h_dim, 4 * h_dim))
    b_f = (u(ks[3], (4 * h_dim,)) + u(ks[4], (4 * h_dim,))).reshape(1, 4 * h_dim)

    w_ih_b = u(ks[5], (emb_dim, 4 * h_dim))
    w_hh_b = u(ks[6], (h_dim, 4 * h_dim))
    b_b = (u(ks[7], (4 * h_dim,)) + u(ks[8], (4 * h_dim,))).reshape(1, 4 * h_dim)

    return dict(embed=embed,
                w_ih_f=w_ih_f, w_hh_f=w_hh_f, b_f=b_f,
                w_ih_b=w_ih_b, w_hh_b=w_hh_b, b_b=b_b)


# ----------------------------- pure-JAX reference --------------------------- #

def lstm_dir_ref(x_tbe, w_ih_t, w_hh_t, bias, reverse):
    T, B, E = x_tbe.shape
    H = w_hh_t.shape[0]

    def step(carry, xt):
        h, c = carry
        gates = xt @ w_ih_t + h @ w_hh_t + bias
        i_g = jax.nn.sigmoid(gates[:, 0 * H:1 * H])
        f_g = jax.nn.sigmoid(gates[:, 1 * H:2 * H])
        g_g = jnp.tanh(gates[:, 2 * H:3 * H])
        o_g = jax.nn.sigmoid(gates[:, 3 * H:4 * H])
        c2 = f_g * c + i_g * g_g
        h2 = o_g * jnp.tanh(c2)
        return (h2, c2), h2

    xs = x_tbe[::-1] if reverse else x_tbe
    init = (jnp.zeros((B, H), jnp.float32), jnp.zeros((B, H), jnp.float32))
    _, hs = jax.lax.scan(step, init, xs)
    return hs[::-1] if reverse else hs


def encoder_rnn_ref(tokens, params):
    emb = jnp.take(params["embed"], tokens, axis=0)
    x_tbe = jnp.transpose(emb, (1, 0, 2))
    out_f = lstm_dir_ref(x_tbe, params["w_ih_f"], params["w_hh_f"], params["b_f"], False)
    out_b = lstm_dir_ref(x_tbe, params["w_ih_b"], params["w_hh_b"], params["b_b"], True)
    return jnp.transpose(out_f + out_b, (1, 0, 2))


# ----------------------------- main ----------------------------------------- #

if __name__ == "__main__":
    B, T = 2, 8           # batch, sequence length
    V, E, H = 50, 16, 32  # vocab, emb_dim, h_dim
    PAD = 0

    key = jax.random.PRNGKey(0)
    k_par, k_tok = jax.random.split(key)

    params = init_params(k_par, V, E, H, PAD)
    tokens = jax.random.randint(k_tok, (B, T), 0, V, dtype=jnp.int32)

    prep = prepare_encoder_params(params)

    out = jax.block_until_ready(encoder_rnn_forward(tokens, prep))
    ref = jax.block_until_ready(encoder_rnn_ref(tokens, params))

    assert out.shape == (B, T, H), out.shape
    assert jnp.allclose(out, ref, atol=1e-5, rtol=1e-5), \
        float(jnp.max(jnp.abs(out - ref)))

    print("KERNEL_OK")
</pallas_src>

<mosaic_0001>
module attributes {stable_mosaic.version = 11 : i64} {
  func.func @input_proj_kernel(%arg0: i32, %arg1: i32, %arg2: memref<64x16xf32, #tpu.memory_space<vmem>>, %arg3: memref<1x16x128xf32, #tpu.memory_space<vmem>>, %arg4: memref<1x1x128xf32, #tpu.memory_space<vmem>>, %arg5: memref<1x64x128xf32, #tpu.memory_space<vmem>>) attributes {dimension_semantics = [#tpu.dimension_semantics<parallel>, #tpu.dimension_semantics<parallel>], iteration_bounds = array<i64: 2, 1>, scalar_prefetch = 0 : i64, scratch_operands = 0 : i64, tpu.core_type = #tpu.core_type<tc>, window_params = [{transform_indices = @transform_0, window_bounds = array<i64: 64, 16>}, {transform_indices = @transform_1, window_bounds = array<i64: 1, 16, 128>}, {transform_indices = @transform_2, window_bounds = array<i64: 1, 1, 128>}, {transform_indices = @transform_3, window_bounds = array<i64: 1, 64, 128>}]} {
    %c0 = arith.constant 0 : index
    %c0_0 = arith.constant 0 : index
    %0 = vector.load %arg2[%c0, %c0_0] : memref<64x16xf32, #tpu.memory_space<vmem>>, vector<64x16xf32>
    %c0_1 = arith.constant 0 : index
    %c0_2 = arith.constant 0 : index
    %c0_3 = arith.constant 0 : index
    %1 = vector.load %arg3[%c0_1, %c0_2, %c0_3] : memref<1x16x128xf32, #tpu.memory_space<vmem>>, vector<1x16x128xf32>
    %2 = vector.shape_cast %1 : vector<1x16x128xf32> to vector<16x128xf32>
    %cst = arith.constant dense<0.000000e+00> : vector<64x128xf32>
    %3 = tpu.matmul %0, %2, %cst {dimension_numbers = #tpu.dot_dimension_numbers<[1], [0], [0], [1], [0, 0, 1, 1], [], []>} : vector<64x16xf32>, vector<16x128xf32>, vector<64x128xf32> -> vector<64x128xf32>
    %c0_4 = arith.constant 0 : index
    %c0_5 = arith.constant 0 : index
    %c0_6 = arith.constant 0 : index
    %4 = vector.load %arg4[%c0_4, %c0_5, %c0_6] : memref<1x1x128xf32, #tpu.memory_space<vmem>>, vector<1x1x128xf32>
    %5 = vector.shape_cast %4 : vector<1x1x128xf32> to vector<1x128xf32>
    %6 = vector.broadcast %5 : vector<1x128xf32> to vector<64x128xf32>
    %7 = arith.addf %3, %6 : vector<64x128xf32>
    %c0_7 = arith.constant 0 : index
    %c0_8 = arith.constant 0 : index
    %c0_9 = arith.constant 0 : index
    %8 = vector.load %arg5[%c0_7, %c0_8, %c0_9] : memref<1x64x128xf32, #tpu.memory_space<vmem>>, vector<1x64x128xf32>
    %9 = vector.shape_cast %8 : vector<1x64x128xf32> to vector<64x128xf32>
    %10 = vector.shape_cast %7 : vector<64x128xf32> to vector<1x64x128xf32>
    tpu.vector_store %arg5[%c0_7, %c0_8, %c0_9], %10 {strides = array<i32>} : memref<1x64x128xf32, #tpu.memory_space<vmem>>, vector<1x64x128xf32>,
    return
  }
  func.func @transform_0(%arg0: i32, %arg1: i32) -> (i32, i32) {
    %c0_i32 = arith.constant 0 : i32
    %c0_i32_0 = arith.constant 0 : i32
    return %arg1, %c0_i32 : i32, i32
  }
  func.func @transform_1(%arg0: i32, %arg1: i32) -> (i32, i32, i32) {
    %c0_i32 = arith.constant 0 : i32
    %c0_i32_0 = arith.constant 0 : i32
    %c0_i32_1 = arith.constant 0 : i32
    return %arg0, %c0_i32, %c0_i32_0 : i32, i32, i32
  }
  func.func @transform_2(%arg0: i32, %arg1: i32) -> (i32, i32, i32) {
    %c0_i32 = arith.constant 0 : i32
    %c0_i32_0 = arith.constant 0 : i32
    %c0_i32_1 = arith.constant 0 : i32
    return %arg0, %c0_i32, %c0_i32_0 : i32, i32, i32
  }
  func.func @transform_3(%arg0: i32, %arg1: i32) -> (i32, i32, i32) {
    %c0_i32 = arith.constant 0 : i32
    %c0_i32_0 = arith.constant 0 : i32
    return %arg0, %arg1, %c0_i32 : i32, i32, i32
  }
}

</mosaic_0001>

<llo_original>
// kernel: tpu_custom_call.1
$region0: #{tpu_custom_call.1}
  #allocation0 [shape = 'u32[]', space=smem, size = 0x4, offset = 0x4, fixed_abs, tag = 'smem constant byte address 0x4 - core index']
  #allocation1 [shape = 'u32[144,128]{1,0:T(1,128)}', space=vmem, size = 0x12000, scoped, tag = 'internal scratch']
  %s0 = inlined_call_operand.vmem [shape: f32[64,16], index: 0, kind: input, shape index: {}]
  %s1 = inlined_call_operand.vmem [shape: f32[2,16,128], index: 1, kind: input, shape index: {}]
  %s2 = inlined_call_operand.vmem [shape: f32[2,1,128], index: 2, kind: input, shape index: {}]
  %s3 = inlined_call_operand.hbm [shape: f32[2,64,128], index: 3, kind: output, shape index: {}]
  %s4 = sld [smem:[#allocation0]]
  $region45: #{tpu_custom_call.1} parent=0
    _
  %s6 = ssub.s32 1, %s4
  %s7 = scalar_select 0, %s6, %s4
  $region1: #{tpu_custom_call.1} parent=0
    #allocation2 [shape = 'u8[65536]{0}', space=vmem, size = 0x10000, scoped, tag = 'output window, operand 0']
    #allocation3 [shape = 's32[2]{0}', space=sflag, size = 0x8, scoped, tag = 'scoped memory for tpu_custom_call.1']
    %8 = vsyncpa [#allocation3], 0
    %s9 = scalar_lea.sflag [#allocation3], 1
    %10 = vsyncpa %s9, 0
    loop: start=0, step=1, limit=4
    $region2: #{tpu_custom_call.1} parent=1 // loop_pre_header
      _
    $region3: #{tpu_custom_call.1} parent=1 // loop_header
      %s12 = sphi 0, %s16
      %p13 = scmp.ge.s32.totalorder %s12, 4
      %s19 = sphi 0, %s31
      %s20 = sphi 0, %s27
      %s21 = sphi 0, %s19
      %s22 = sphi 0, %s20
      %s23 = sphi 0, %s21
      %s24 = sphi 0, %s22
      %s34 = sphi 0, %s36
      %s37 = sphi 0, %s34
      %s38 = sphi 0, %s37
      %s54 = sphi 0, %s38
      %s60 = sphi 0, %s62
      %s63 = sphi 0, %s60
      %s64 = sphi 0, %s63
      %s80 = sphi 0, %s64
      %s86 = sphi 0, %s88
      %s89 = sphi 0, %s86
      %s90 = sphi 0, %s89
      %s106 = sphi 0, %s90
      %s114 = sphi 0, %s116
      %s117 = sphi 0, %s114
      %s118 = sphi 0, %s117
      %s134 = sphi 0, %s118
    $region4: #{tpu_custom_call.1} parent=1 // loop_header_branch
      %15 = sbr.rel (%p13) target = $region8
    $region5: #{tpu_custom_call.1} parent=1 // loop_body
      %s17 = ssub.s32 %s12, 1
      %s18 = ssub.s32 %s12, 2
      %s25 = sadd.s32 1, %s20
      %p26 = scmp.ge.s32.totalorder %s25, 1
      %s27 = scalar_select %p26, 0, %s25
      %s28 = sadd.s32 1, %s19
      %s29 = scalar_select %p26, %s28, %s19
      %p30 = scmp.ge.s32.totalorder %s29, 2
      %s31 = scalar_select %p30, 0, %s29
      %s32 = ssub.s32 %s20, %s27
      %p33 = scmp.eq.s32.totalorder %s32, 0
      %s35 = sadd.s32 %s34, 1
      %s36 = scalar_select %p33, %s34, %s35
      %p39 = pneg %p33
      %p40 = scmp.eq.s32.totalorder %s12, 1
      %p41 = por %p39, %p40
      %p42 = scmp.ne.s32.totalorder %s34, %s37
      %p43 = scmp.eq.s32.totalorder %s12, 0
      %p44 = por %p42, %p43
      %p45 = scmp.ne.s32.totalorder %s34, %s37
      %p46 = scmp.eq.s32.totalorder %s17, 1
      %p47 = por %p45, %p46
      %p48 = scmp.ne.s32.totalorder %s37, %s38
      %p49 = scmp.eq.s32.totalorder %s17, 0
      %p50 = por %p48, %p49
      %p51 = scmp.ne.s32.totalorder %s37, %s38
      %p52 = scmp.eq.s32.totalorder %s18, 1
      %p53 = por %p51, %p52
      %p55 = scmp.ne.s32.totalorder %s38, %s54
      %p56 = scmp.eq.s32.totalorder %s18, 0
      %p57 = por %p55, %p56
      %s58 = ssub.s32 %s19, %s31
      %p59 = scmp.eq.s32.totalorder %s58, 0
      %s61 = sadd.s32 %s60, 1
      %s62 = scalar_select %p59, %s60, %s61
      %p65 = pneg %p59
      %p66 = scmp.eq.s32.totalorder %s12, 1
      %p67 = por %p65, %p66
      %p68 = scmp.ne.s32.totalorder %s60, %s63
      %p69 = scmp.eq.s32.totalorder %s12, 0
      %p70 = por %p68, %p69
      %p71 = scmp.ne.s32.totalorder %s60, %s63
      %p72 = scmp.eq.s32.totalorder %s17, 1
      %p73 = por %p71, %p72
      %p74 = scmp.ne.s32.totalorder %s63, %s64
      %p75 = scmp.eq.s32.totalorder %s17, 0
      %p76 = por %p74, %p75
      %p77 = scmp.ne.s32.totalorder %s63, %s64
      %p78 = scmp.eq.s32.totalorder %s18, 1
      %p79 = por %p77, %p78
      %p81 = scmp.ne.s32.totalorder %s64, %s80
      %p82 = scmp.eq.s32.totalorder %s18, 0
      %p83 = por %p81, %p82
      %s84 = ssub.s32 %s19, %s31
      %p85 = scmp.eq.s32.totalorder %s84, 0
      %s87 = sadd.s32 %s86, 1
      %s88 = scalar_select %p85, %s86, %s87
      %p91 = pneg %p85
      %p92 = scmp.eq.s32.totalorder %s12, 1
      %p93 = por %p91, %p92
      %p94 = scmp.ne.s32.totalorder %s86, %s89
      %p95 = scmp.eq.s32.totalorder %s12, 0
      %p96 = por %p94, %p95
      %p97 = scmp.ne.s32.totalorder %s86, %s89
      %p98 = scmp.eq.s32.totalorder %s17, 1
      %p99 = por %p97, %p98
      %p100 = scmp.ne.s32.totalorder %s89, %s90
      %p101 = scmp.eq.s32.totalorder %s17, 0
      %p102 = por %p100, %p101
      %p103 = scmp.ne.s32.totalorder %s89, %s90
      %p104 = scmp.eq.s32.totalorder %s18, 1
      %p105 = por %p103, %p104
      %p107 = scmp.ne.s32.totalorder %s90, %s106
      %p108 = scmp.eq.s32.totalorder %s18, 0
      %p109 = por %p107, %p108
      %s110 = ssub.s32 %s19, %s31
      %s111 = ssub.s32 %s20, %s27
      %s112 = sor.u32 %s110, %s111
      %p113 = scmp.eq.s32.totalorder %s112, 0
      %s115 = sadd.s32 %s114, 1
      %s116 = scalar_select %p113, %s114, %s115
      %p119 = pneg %p113
      %p120 = scmp.eq.s32.totalorder %s12, 1
      %p121 = por %p119, %p120
      %p122 = scmp.ne.s32.totalorder %s114, %s117
      %p123 = scmp.eq.s32.totalorder %s12, 0
      %p124 = por %p122, %p123
      %p125 = scmp.ne.s32.totalorder %s114, %s117
      %p126 = scmp.eq.s32.totalorder %s17, 1
      %p127 = por %p125, %p126
      %p128 = scmp.ne.s32.totalorder %s117, %s118
      %p129 = scmp.eq.s32.totalorder %s17, 0
      %p130 = por %p128, %p129
      %p131 = scmp.ne.s32.totalorder %s117, %s118
      %p132 = scmp.eq.s32.totalorder %s18, 1
      %p133 = por %p131, %p132
      %p135 = scmp.ne.s32.totalorder %s118, %s134
      %p136 = scmp.eq.s32.totalorder %s18, 0
      %p137 = por %p135, %p136
      %p138 = scmp.le.s32.totalorder 1, %s12
      %p139 = scmp.lt.s32.totalorder %s12, 3
      %p140 = pnand %p138, %p139
      %p141 = pneg %p140
      // Predicated region
      $region9: #{tpu_custom_call.1} parent=5 // pred_check
        _
      $region10: #{tpu_custom_call.1} parent=5 // pred_check_branch
        %143 = sbr.rel (%p140) target = $region12
      $region11: #{tpu_custom_call.1} parent=5 // pred_region
        %s144 = ssub.s32 %s12, 1
        // Predicated region
        $region13: #{tpu_custom_call.1} parent=11 // pred_check
          %p145 = pneg %p50
        $region14: #{tpu_custom_call.1} parent=11 // pred_check_branch
          %147 = sbr.rel (%p145) target = $region16
        $region15: #{tpu_custom_call.1} parent=11 // pred_region
          %s148 = smul.u32 8, %s22
          %p149 = scmp.lt.s32.totalorder %s148, 7
          %s150 = scalar_select %p149, %s148, 7
          %s151 = smul.addr %s150, 8
          %s152 = scalar_lea.vmem %s0, %s151
          %s153 = smul.u32 8, %s22
        $region16: #{tpu_custom_call.1} parent=11 // pred_fallthru
          _
      $region12: #{tpu_custom_call.1} parent=5 // pred_fallthru
        _
      %p154 = scmp.lt.s32.totalorder %s12, 2
      // Predicated region
      $region17: #{tpu_custom_call.1} parent=5 // pred_check
        %p155 = pneg %p154
      $region18: #{tpu_custom_call.1} parent=5 // pred_check_branch
        %157 = sbr.rel (%p155) target = $region20
      $region19: #{tpu_custom_call.1} parent=5 // pred_region
        // Predicated region
        $region21: #{tpu_custom_call.1} parent=19 // pred_check
          %p158 = pneg %p70
        $region22: #{tpu_custom_call.1} parent=19 // pred_check_branch
          %160 = sbr.rel (%p158) target = $region24
        $region23: #{tpu_custom_call.1} parent=19 // pred_region
          %p161 = scmp.lt.s32.totalorder %s19, 1
          %s162 = scalar_select %p161, %s19, 1
          %s163 = smul.addr %s162, 2
          %s164 = smul.addr %s163, 8
          %s165 = scalar_lea.vmem %s1, %s164
        $region24: #{tpu_custom_call.1} parent=19 // pred_fallthru
          _
        // Predicated region
        $region25: #{tpu_custom_call.1} parent=19 // pred_check
          %p166 = pneg %p96
        $region26: #{tpu_custom_call.1} parent=19 // pred_check_branch
          %168 = sbr.rel (%p166) target = $region28
        $region27: #{tpu_custom_call.1} parent=19 // pred_region
          %p169 = scmp.lt.s32.totalorder %s19, 1
          %s170 = scalar_select %p169, %s19, 1
          %s171 = scalar_lea.vmem %s2, %s170
        $region28: #{tpu_custom_call.1} parent=19 // pred_fallthru
          _
      $region20: #{tpu_custom_call.1} parent=5 // pred_fallthru
        _
      %p172 = scmp.le.s32.totalorder 1, %s12
      %p173 = scmp.lt.s32.totalorder %s12, 3
      %p174 = pnand %p172, %p173
      %p175 = pneg %p174
      // Predicated region
      $region29: #{tpu_custom_call.1} parent=5 // pred_check
        _
      $region30: #{tpu_custom_call.1} parent=5 // pred_check_branch
        %177 = sbr.rel (%p174) target = $region32
      $region31: #{tpu_custom_call.1} parent=5 // pred_region
        %s178 = ssub.s32 %s12, 1
        %s179 = smul.u32 8, %s22
        %p180 = scmp.lt.s32.totalorder %s179, 7
        %s181 = scalar_select %p180, %s179, 7
        %s182 = smul.addr %s181, 8
        %s183 = scalar_lea.vmem %s0, %s182
        %p184 = pneg %p50
        %p185 = pneg %p47
        %p186 = scmp.lt.s32.totalorder %s21, 1
        %s187 = scalar_select %p186, %s21, 1
        %s188 = smul.addr %s187, 2
        %s189 = smul.addr %s188, 8
        %s190 = scalar_lea.vmem %s1, %s189
        %p191 = pneg %p76
        %p192 = pneg %p73
        %p193 = scmp.lt.s32.totalorder %s21, 1
        %s194 = scalar_select %p193, %s21, 1
        %s195 = scalar_lea.vmem %s2, %s194
        %p196 = pneg %p102
        %p197 = pneg %p99
        %p198 = pneg %p130
        %p199 = pneg %p127
        %s200 = sand.u32 %s117, 1
        %s201 = scalar_lea.sflag [#allocation3], %s200
        %s202 = sand.u32 %s117, 1
        %s203 = smul.addr %s202, 64
        %s204 = scalar_lea.vmem [#allocation2], %s203
        %s205 = smul.u32 8, %s22
        %p206 = scmp.lt.s32.totalorder %s205, 7
        %s207 = scalar_select %p206, %s205, 7
        %s208 = smul.addr %s207, 8
        %s209 = scalar_lea.vmem %s0, %s208
        %s210 = smul.u32 8, %s22
        %p211 = scmp.lt.s32.totalorder %s21, 1
        %s212 = scalar_select %p211, %s21, 1
        %s213 = smul.addr %s212, 2
        %s214 = smul.addr %s213, 8
        %s215 = scalar_lea.vmem %s1, %s214
        %p216 = scmp.lt.s32.totalorder %s21, 1
        %s217 = scalar_select %p216, %s21, 1
        %s218 = scalar_lea.vmem %s2, %s217
        %s219 = smul.u32 8, %s22
        %v220 = vld [vmem:[%s209] sm:$0xff]
        %v221 = vld [vmem:[%s209 + $0x8] sm:$0xff]
        %v222 = vld [vmem:[%s209 + $0x10] sm:$0xff]
        %v223 = vld [vmem:[%s209 + $0x18] sm:$0xff]
        %v224 = vld [vmem:[%s209 + $0x20] sm:$0xff]
        %v225 = vld [vmem:[%s209 + $0x28] sm:$0xff]
        %v226 = vld [vmem:[%s209 + $0x30] sm:$0xff]
        %v227 = vld [vmem:[%s209 + $0x38] sm:$0xff]
        %v228 = vld [vmem:[%s215] sm:$0xff]
        %v229 = vld [vmem:[%s215 + $0x8] sm:$0xff]
        %v230 = vld [vmem:[%s218] sm:$0x1]
        %v232 = vlaneseq
        %v233 = vshrl.u32 %v232, 7
        %v234 = vsub.s32 0, %v233
        %v235 = vrot.slane %v230, %v234
        %vm237 = vcmask 130048
        %v239 = vsel %vm237, %v220, 0
        %v242 = vsel %vm237, %v221, 0
        %v245 = vsel %vm237, %v222, 0
        %v248 = vsel %vm237, %v223, 0
        %v251 = vsel %vm237, %v224, 0
        %v254 = vsel %vm237, %v225, 0
        %v257 = vsel %vm237, %v226, 0
        %v260 = vsel %vm237, %v227, 0
        %262 = vmatprep.subr.mxu0 0.0
        %263 = vmatpush1.msra.mxu0 0.0
        %264 = vmatprep.subr.mxu0 0.0
        %265 = vmatpush1.msra.mxu0 0.0
        %266 = vmatprep.subr.mxu0 0.0
        %267 = vmatpush1.msra.mxu0 0.0
        %268 = vmatprep.subr.mxu0 0.0
        %269 = vmatpush1.msra.mxu0 0.0
        %270 = vmatprep.subr.mxu0 0.0
        %271 = vmatpush1.msra.mxu0 0.0
        %272 = vmatprep.subr.mxu0 0.0
        %273 = vmatpush1.msra.mxu0 0.0
        %274 = vmatprep.subr.mxu0 0.0
        %275 = vmatpush1.msra.mxu0 0.0
        %276 = vmatprep.subr.mxu0 0.0
        %277 = vmatpush1.msra.mxu0 0.0
        %278 = vmatprep.subr.mxu0 0.0
        %279 = vmatpush1.msra.mxu0 0.0
        %280 = vmatprep.subr.mxu0 0.0
        %281 = vmatpush1.msra.mxu0 0.0
        %282 = vmatprep.subr.mxu0 0.0
        %283 = vmatpush1.msra.mxu0 0.0
        %284 = vmatprep.subr.mxu0 0.0
        %285 = vmatpush1.msra.mxu0 0.0
        %286 = vmatprep.subr.mxu0 0.0
        %287 = vmatpush1.msra.mxu0 0.0
        %288 = vmatprep.subr.mxu0 0.0
        %289 = vmatpush1.msra.mxu0 0.0
        %290 = vmatprep.subr.mxu0 0.0
        %291 = vmatpush1.msra.mxu0 %v229
        %292 = vmatprep.subr.mxu0 0.0
        %293 = vmatpush1.msra.mxu0 %v228
        %294 = vmatprep.subr.mxu0 0.0
        %295 = vmatpush2.msra.mxu0 0.0
        %296 = vmatprep.subr.mxu0 0.0
        %297 = vmatpush2.msra.mxu0 0.0
        %298 = vmatprep.subr.mxu0 0.0
        %299 = vmatpush2.msra.mxu0 0.0
        %300 = vmatprep.subr.mxu0 0.0
        %301 = vmatpush2.msra.mxu0 0.0
        %302 = vmatprep.subr.mxu0 0.0
        %303 = vmatpush2.msra.mxu0 0.0
        %304 = vmatprep.subr.mxu0 0.0
        %305 = vmatpush2.msra.mxu0 0.0
        %306 = vmatprep.subr.mxu0 0.0
        %307 = vmatpush2.msra.mxu0 0.0
        %308 = vmatprep.subr.mxu0 0.0
        %309 = vmatpush2.msra.mxu0 0.0
        %310 = vmatprep.subr.mxu0 0.0
        %311 = vmatpush2.msra.mxu0 0.0
        %312 = vmatprep.subr.mxu0 0.0
        %313 = vmatpush2.msra.mxu0 0.0
        %314 = vmatprep.subr.mxu0 0.0
        %315 = vmatpush2.msra.mxu0 0.0
        %316 = vmatprep.subr.mxu0 0.0
        %317 = vmatpush2.msra.mxu0 0.0
        %318 = vmatprep.subr.mxu0 0.0
        %319 = vmatpush2.msra.mxu0 0.0
        %320 = vmatprep.subr.mxu0 0.0
        %321 = vmatpush2.msra.mxu0 0.0
        %322 = vmatprep.subr.mxu0 0.0
        %323 = vmatpush2.msra.mxu0 0.0
        %324 = vmatprep.subr.mxu0 0.0
        %325 = vmatpush2.msra.mxu0 0.0
        %326 = vmatprep.mubr.f32.mxu0 0.0
        %327 = vmatmul.mubr.f32.gmra.mxu0 %v239
        %v328 = vpop.f32.mrf.mxu0
        %v329 = vadd.f32 %v235, %v328
        %v330 = vpop.f32.mrf.mxu0
        %331 = vmatprep.mubr.f32.mxu0 0.0
        %332 = vmatmul.mubr.f32.gmra.mxu0 %v242
        %v333 = vpop.f32.mrf.mxu0
        %v334 = vadd.f32 %v235, %v333
        %v335 = vpop.f32.mrf.mxu0
        %336 = vmatprep.mubr.f32.mxu0 0.0
        %337 = vmatmul.mubr.f32.gmra.mxu0 %v245
        %v338 = vpop.f32.mrf.mxu0
        %v339 = vadd.f32 %v235, %v338
        %v340 = vpop.f32.mrf.mxu0
        %341 = vmatprep.mubr.f32.mxu0 0.0
        %342 = vmatmul.mubr.f32.gmra.mxu0 %v248
        %v343 = vpop.f32.mrf.mxu0
        %v344 = vadd.f32 %v235, %v343
        %v345 = vpop.f32.mrf.mxu0
        %346 = vmatprep.mubr.f32.mxu0 0.0
        %347 = vmatmul.mubr.f32.gmra.mxu0 %v251
        %v348 = vpop.f32.mrf.mxu0
        %v349 = vadd.f32 %v235, %v348
        %v350 = vpop.f32.mrf.mxu0
        %351 = vmatprep.mubr.f32.mxu0 0.0
        %352 = vmatmul.mubr.f32.gmra.mxu0 %v254
        %v353 = vpop.f32.mrf.mxu0
        %v354 = vadd.f32 %v235, %v353
        %v355 = vpop.f32.mrf.mxu0
        %356 = vmatprep.mubr.f32.mxu0 0.0
        %357 = vmatmul.mubr.f32.gmra.mxu0 %v257
        %v358 = vpop.f32.mrf.mxu0
        %v359 = vadd.f32 %v235, %v358
        %v360 = vpop.f32.mrf.mxu0
        %361 = vmatprep.mubr.f32.mxu0 0.0
        %362 = vmatmul.mubr.f32.gmra.mxu0 %v260
        %v363 = vpop.f32.mrf.mxu0
        %v364 = vadd.f32 %v235, %v363
        %v365 = vpop.f32.mrf.mxu0
        %366 = vdwg.mxu0
        %367 = vst [vmem:[%s204] sm:$0xff] %v329
        %368 = vst [vmem:[%s204 + $0x8] sm:$0xff] %v334
        %369 = vst [vmem:[%s204 + $0x10] sm:$0xff] %v339
        %370 = vst [vmem:[%s204 + $0x18] sm:$0xff] %v344
        %371 = vst [vmem:[%s204 + $0x20] sm:$0xff] %v349
        %372 = vst [vmem:[%s204 + $0x28] sm:$0xff] %v354
        %373 = vst [vmem:[%s204 + $0x30] sm:$0xff] %v359
        %374 = vst [vmem:[%s204 + $0x38] sm:$0xff] %v364
        %s375 = sand.u32 %s117, 1
        %s376 = scalar_lea.sflag [#allocation3], %s375
        %s377 = sand.u32 %s117, 1
        %s378 = smul.addr %s377, 64
        %s379 = scalar_lea.vmem [#allocation2], %s378
        // Predicated region
        $region33: #{tpu_custom_call.1} parent=31 // pred_check
          %p380 = pneg %p127
        $region34: #{tpu_custom_call.1} parent=31 // pred_check_branch
          %382 = sbr.rel (%p380) target = $region36
        $region35: #{tpu_custom_call.1} parent=31 // pred_region
          %s383 = smul.u32 8, %s22
          %s385 = ssub.s32 1024, 1024
          %386 = vsyncadd %s376, %s385
          %s387 = smul.addr %s21, 8
          %s388 = sadd.s32 %s383, %s387
          %s389 = smul.addr %s388, 128
          %s390 = scalar_lea.hbm %s3, %s389
          %s391 = sshll.u32 %s379, 4
          %s392 = int_to_ptr.vmem [resolvable:$true] %s391
          %397 = dma.vmem_to_hbm [thread:$0]  %s392, 1024, %s390, %s376, 128, 128, 8
        $region36: #{tpu_custom_call.1} parent=31 // pred_fallthru
          _
      $region32: #{tpu_custom_call.1} parent=5 // pred_fallthru
        _
      %p398 = scmp.le.s32.totalorder 2, %s12
      // Predicated region
      $region37: #{tpu_custom_call.1} parent=5 // pred_check
        %p399 = pneg %p398
      $region38: #{tpu_custom_call.1} parent=5 // pred_check_branch
        %401 = sbr.rel (%p399) target = $region40
      $region39: #{tpu_custom_call.1} parent=5 // pred_region
        %s402 = ssub.s32 %s12, 2
        // Predicated region
        $region41: #{tpu_custom_call.1} parent=39 // pred_check
          %p403 = pneg %p133
        $region42: #{tpu_custom_call.1} parent=39 // pred_check_branch
          %405 = sbr.rel (%p403) target = $region44
        $region43: #{tpu_custom_call.1} parent=39 // pred_region
          %s406 = sand.u32 %s118, 1
          %s407 = scalar_lea.sflag [#allocation3], %s406
          %s408 = sand.u32 %s118, 1
          %s409 = smul.addr %s408, 64
          %s410 = scalar_lea.vmem [#allocation2], %s409
          %411 = dma.done %s407, 1024
        $region44: #{tpu_custom_call.1} parent=39 // pred_fallthru
          _
      $region40: #{tpu_custom_call.1} parent=5 // pred_fallthru
        _
    $region6: #{tpu_custom_call.1} parent=1 // loop_footer
      %s16 = sadd.s32 1, %s12
    $region7: #{tpu_custom_call.1} parent=1 // loop_footer_branch
      %11 = sbr.rel target = $region3
    $region8: #{tpu_custom_call.1} parent=1 // loop_exit
      _
    %412 = vsyncpa [#allocation3], 1
    %s413 = scalar_lea.sflag [#allocation3], 1
    %414 = vsyncpa %s413, 1

</llo_original>
